<compile_context>
chip_gen: v5e
topology: v5e:2x2
jax: 0.10.0
libtpu: 0.0.40
codegen_flags: <defaults>
</compile_context>

<pallas_src>
import functools

import jax
import jax.numpy as jnp
from jax.experimental import pallas as pl
from jax.experimental.pallas import tpu as pltpu


# --------------------------------------------------------------------------- #
# Kernel 1: streaming global-average-pool over H*W (the memory-bound part).
# --------------------------------------------------------------------------- #
def _se_pool_kernel(x_ref, pooled_ref, acc_ref, *, hw, hw_tile, inv_hw):
    # x_ref:      (1, c_tile, hw_tile)  current spatial chunk of one batch elem
    # pooled_ref: (1, 1, c_tile)        per-channel mean (written on last chunk)
    # acc_ref:    (1, c_tile, hw_tile)  f32 elementwise accumulator (scratch)
    s = pl.program_id(2)

    @pl.when(s == 0)
    def _init():
        acc_ref[...] = jnp.zeros_like(acc_ref)

    x = x_ref[...].astype(jnp.float32)

    if hw % hw_tile != 0:
        # Input is NOT padded in HBM: lanes of the last (partial) tile beyond
        # H*W hold unspecified data and must be masked before accumulation.
        valid = hw - s * hw_tile
        lane = jax.lax.broadcasted_iota(jnp.int32, x.shape, dimension=2)
        x = jnp.where(lane < valid, x, 0.0)

    # Layout-preserving VPU add each step; the cross-lane (XLU) reduce is
    # deferred to the finalize branch.
    acc_ref[...] += x

    @pl.when(s == pl.num_programs(2) - 1)
    def _finalize():
        pooled = jnp.sum(acc_ref[...], axis=-1) * inv_hw          # (1, c_tile)
        pooled_ref[...] = pooled.reshape(pooled_ref.shape).astype(
            pooled_ref.dtype)


# --------------------------------------------------------------------------- #
# Kernel 2: tiny MLP epilogue, batched over N (single shot, whole refs in VMEM).
# --------------------------------------------------------------------------- #
def _se_mlp_kernel(pooled_ref, wsq_ref, bsq_ref, wex_ref, bex_ref, out_ref):
    # pooled_ref: (N, C) f32.  wsq: (C, S), wex: (S, C) (pre-transposed).
    pooled = pooled_ref[...].astype(jnp.float32)
    wsq = wsq_ref[...]
    a = pooled if wsq.dtype == jnp.float32 else pooled.astype(wsq.dtype)
    h = jnp.dot(a, wsq, preferred_element_type=jnp.float32)       # (N, S)
    h = jnp.maximum(h + bsq_ref[...].astype(jnp.float32), 0.0)    # ReLU
    wex = wex_ref[...]
    hh = h if wex.dtype == jnp.float32 else h.astype(wex.dtype)
    o = jnp.dot(hh, wex, preferred_element_type=jnp.float32)      # (N, C)
    o = jax.nn.sigmoid(o + bex_ref[...].astype(jnp.float32))
    out_ref[...] = o.astype(out_ref.dtype)


# --------------------------------------------------------------------------- #
# Wrapper
# --------------------------------------------------------------------------- #
def squeeze_and_excitation(x, w_sq, b_sq, w_ex, b_ex, *,
                           target_block_bytes=2 * 1024 * 1024):
    """x: (N, C, H, W) NCHW.  Returns the attention tensor of shape (N, C, 1, 1)."""
    n, c, h, w = x.shape
    hw = h * w
    sq = w_sq.shape[0]

    x_flat = x.reshape(n, c, hw)

    # Channel tiling: extra parallel grid axis (v7x megacore work at small N).
    if c >= 256 and c % 128 == 0:
        c_tile = 128
    else:
        c_tile = c
    num_c_tiles = c // c_tile

    # HW tile sized by bytes (amortize ~0.35us per-step overhead), mult of 128.
    itemsize = x.dtype.itemsize
    lanes = target_block_bytes // max(1, c_tile * itemsize)
    lanes = max(512, (lanes // 128) * 128)
    if hw <= lanes:
        hw_tile = hw                      # single full-extent tile, no masking
    else:
        hw_tile = lanes                   # multiple of 128; last tile is masked
    num_hw_tiles = pl.cdiv(hw, hw_tile)

    # Explicit VMEM budget: 2x double-buffered x block + f32 acc + headroom.
    x_block_bytes = c_tile * hw_tile * itemsize
    acc_bytes = c_tile * hw_tile * 4
    vmem_need = 2 * x_block_bytes + acc_bytes + 4 * c_tile * 4 + (1 << 20)
    vmem_limit = int(min(max(2 * vmem_need, 16 << 20), 48 << 20))

    pool_kernel = functools.partial(
        _se_pool_kernel, hw=hw, hw_tile=hw_tile, inv_hw=1.0 / float(hw))

    pool_cost = pl.CostEstimate(
        flops=n * c * hw,
        transcendentals=0,
        bytes_accessed=x_flat.size * itemsize + n * c * 4,
    )

    pooled = pl.pallas_call(
        pool_kernel,
        out_shape=jax.ShapeDtypeStruct((n, 1, c), jnp.float32),
        grid=(n, num_c_tiles, num_hw_tiles),
        in_specs=[
            pl.BlockSpec((1, c_tile, hw_tile), lambda ni, ci, si: (ni, ci, si)),
        ],
        out_specs=pl.BlockSpec((1, 1, c_tile), lambda ni, ci, si: (ni, 0, ci)),
        scratch_shapes=[pltpu.VMEM((1, c_tile, hw_tile), jnp.float32)],
        compiler_params=pltpu.CompilerParams(
            dimension_semantics=("parallel", "parallel", "arbitrary"),
            vmem_limit_bytes=vmem_limit),
        cost_estimate=pool_cost,
    )(x_flat)

    pooled = pooled.reshape(n, c)         # (N, C) f32 channel means

    # Tiny MLP epilogue: one batched (N,C)@(C,S) / (N,S)@(S,C) Pallas call.
    wsq_t = w_sq.T                        # (C, S)
    wex_t = w_ex.T                        # (S, C)
    bsq2 = b_sq.reshape(1, -1)            # (1, S)
    bex2 = b_ex.reshape(1, -1)            # (1, C)

    mlp_cost = pl.CostEstimate(
        flops=4 * n * c * sq,
        transcendentals=n * c,
        bytes_accessed=(n * c * 4
                        + wsq_t.size * wsq_t.dtype.itemsize
                        + wex_t.size * wex_t.dtype.itemsize
                        + n * c * x.dtype.itemsize),
    )

    attn = pl.pallas_call(
        _se_mlp_kernel,
        out_shape=jax.ShapeDtypeStruct((n, c), x.dtype),
        cost_estimate=mlp_cost,
    )(pooled, wsq_t, bsq2, wex_t, bex2)

    return attn.reshape(n, c, 1, 1)


# --------------------------------------------------------------------------- #
# Reference + tests
# --------------------------------------------------------------------------- #
def _reference(x, w_sq, b_sq, w_ex, b_ex):
    pooled = jnp.mean(x.astype(jnp.float32), axis=(2, 3))
    h = jnp.maximum(pooled @ w_sq.T.astype(jnp.float32)
                    + b_sq.astype(jnp.float32), 0.0)
    o = jax.nn.sigmoid(h @ w_ex.T.astype(jnp.float32)
                       + b_ex.astype(jnp.float32))
    n, c = o.shape
    return o.reshape(n, c, 1, 1).astype(x.dtype)


if __name__ == "__main__":
    key = jax.random.PRNGKey(0)

    def _make(k, n, c, hh, ww, s):
        k_x, k_wsq, k_bsq, k_wex, k_bex = jax.random.split(k, 5)
        x = jax.random.normal(k_x, (n, c, hh, ww), dtype=jnp.float32)
        w_sq = jax.random.normal(k_wsq, (s, c), dtype=jnp.float32) * 0.1
        b_sq = jax.random.normal(k_bsq, (s,), dtype=jnp.float32) * 0.1
        w_ex = jax.random.normal(k_wex, (c, s), dtype=jnp.float32) * 0.1
        b_ex = jax.random.normal(k_bex, (c,), dtype=jnp.float32) * 0.1
        return x, w_sq, b_sq, w_ex, b_ex

    k1, k2, k3 = jax.random.split(key, 3)

    # test 1: module-scale shapes (single HW tile path)
    x, w_sq, b_sq, w_ex, b_ex = _make(k1, 2, 4, 16, 16, 2)
    out = squeeze_and_excitation(x, w_sq, b_sq, w_ex, b_ex)
    jax.block_until_ready(out)
    ref = _reference(x, w_sq, b_sq, w_ex, b_ex)
    assert out.shape == (2, 4, 1, 1)
    assert jnp.allclose(out, ref, atol=1e-5, rtol=1e-5)

    # test 2: multi-chunk HW reduction with in-kernel masking of the final
    # partial tile (hw=576, hw_tile forced to 512 via a tiny byte budget)
    x2, w_sq2, b_sq2, w_ex2, b_ex2 = _make(k2, 2, 8, 24, 24, 4)
    out2 = squeeze_and_excitation(x2, w_sq2, b_sq2, w_ex2, b_ex2,
                                  target_block_bytes=4096)
    jax.block_until_ready(out2)
    ref2 = _reference(x2, w_sq2, b_sq2, w_ex2, b_ex2)
    assert out2.shape == (2, 8, 1, 1)
    assert jnp.allclose(out2, ref2, atol=1e-5, rtol=1e-5)

    # test 3: channel-tiled grid (C=256 -> two parallel 128-channel tiles)
    x3, w_sq3, b_sq3, w_ex3, b_ex3 = _make(k3, 2, 256, 8, 8, 16)
    out3 = squeeze_and_excitation(x3, w_sq3, b_sq3, w_ex3, b_ex3)
    jax.block_until_ready(out3)
    ref3 = _reference(x3, w_sq3, b_sq3, w_ex3, b_ex3)
    assert out3.shape == (2, 256, 1, 1)
    assert jnp.allclose(out3, ref3, atol=1e-5, rtol=1e-5)

    print("KERNEL_OK")
</pallas_src>

<mosaic_0001>
module attributes {stable_mosaic.version = 11 : i64} {
  func.func @_se_pool_kernel(%arg0: i32, %arg1: i32, %arg2: i32, %arg3: memref<1x4x256xf32, #tpu.memory_space<vmem>>, %arg4: memref<1x1x4xf32, #tpu.memory_space<vmem>>, %arg5: memref<1x4x256xf32, #tpu.memory_space<vmem>>) attributes {dimension_semantics = [#tpu.dimension_semantics<parallel>, #tpu.dimension_semantics<parallel>, #tpu.dimension_semantics<arbitrary>], iteration_bounds = array<i64: 2, 1, 1>, scalar_prefetch = 0 : i64, scratch_operands = 1 : i64, tpu.core_type = #tpu.core_type<tc>, window_params = [{transform_indices = @transform_0, window_bounds = array<i64: 1, 4, 256>}, {transform_indices = @transform_1, window_bounds = array<i64: 1, 1, 4>}]} {
    %c0_i32 = arith.constant 0 : i32
    %0 = arith.cmpi eq, %arg2, %c0_i32 : i32
    %1 = arith.extui %0 : i1 to i32
    %c0_i32_0 = arith.constant 0 : i32
    %2 = arith.cmpi ne, %1, %c0_i32_0 : i32
    scf.if %2 {
      %cst = arith.constant 0.000000e+00 : f32
      %10 = vector.broadcast %cst : f32 to vector<1x4x256xf32>
      %c0_11 = arith.constant 0 : index
      %c0_12 = arith.constant 0 : index
      %c0_13 = arith.constant 0 : index
      %11 = vector.load %arg5[%c0_11, %c0_12, %c0_13] : memref<1x4x256xf32, #tpu.memory_space<vmem>>, vector<1x4x256xf32>
      tpu.vector_store %arg5[%c0_11, %c0_12, %c0_13], %10 {strides = array<i32>} : memref<1x4x256xf32, #tpu.memory_space<vmem>>, vector<1x4x256xf32>,
    } else {
    }
    %c0 = arith.constant 0 : index
    %c0_1 = arith.constant 0 : index
    %c0_2 = arith.constant 0 : index
    %3 = vector.load %arg3[%c0, %c0_1, %c0_2] : memref<1x4x256xf32, #tpu.memory_space<vmem>>, vector<1x4x256xf32>
    %c0_3 = arith.constant 0 : index
    %c0_4 = arith.constant 0 : index
    %c0_5 = arith.constant 0 : index
    %4 = vector.load %arg5[%c0_3, %c0_4, %c0_5] : memref<1x4x256xf32, #tpu.memory_space<vmem>>, vector<1x4x256xf32>
    %5 = arith.addf %4, %3 : vector<1x4x256xf32>
    %c0_6 = arith.constant 0 : index
    %c0_7 = arith.constant 0 : index
    %c0_8 = arith.constant 0 : index
    %6 = vector.load %arg5[%c0_6, %c0_7, %c0_8] : memref<1x4x256xf32, #tpu.memory_space<vmem>>, vector<1x4x256xf32>
    tpu.vector_store %arg5[%c0_6, %c0_7, %c0_8], %5 {strides = array<i32>} : memref<1x4x256xf32, #tpu.memory_space<vmem>>, vector<1x4x256xf32>,
    %c0_i32_9 = arith.constant 0 : i32
    %7 = arith.cmpi eq, %arg2, %c0_i32_9 : i32
    %8 = arith.extui %7 : i1 to i32
    %c0_i32_10 = arith.constant 0 : i32
    %9 = arith.cmpi ne, %8, %c0_i32_10 : i32
    scf.if %9 {
      %c0_11 = arith.constant 0 : index
      %c0_12 = arith.constant 0 : index
      %c0_13 = arith.constant 0 : index
      %10 = vector.load %arg5[%c0_11, %c0_12, %c0_13] : memref<1x4x256xf32, #tpu.memory_space<vmem>>, vector<1x4x256xf32>
      %cst = arith.constant dense<0.000000e+00> : vector<1x4xf32>
      %11 = vector.multi_reduction <add>, %10, %cst [2] : vector<1x4x256xf32> to vector<1x4xf32>
      %cst_14 = arith.constant 3.906250e-03 : f32
      %12 = vector.broadcast %cst_14 : f32 to vector<1x4xf32>
      %13 = arith.mulf %11, %12 : vector<1x4xf32>
      %14 = vector.shape_cast %13 : vector<1x4xf32> to vector<1x1x4xf32>
      %c0_15 = arith.constant 0 : index
      %c0_16 = arith.constant 0 : index
      %c0_17 = arith.constant 0 : index
      %15 = vector.load %arg4[%c0_15, %c0_16, %c0_17] : memref<1x1x4xf32, #tpu.memory_space<vmem>>, vector<1x1x4xf32>
      tpu.vector_store %arg4[%c0_15, %c0_16, %c0_17], %14 {strides = array<i32>} : memref<1x1x4xf32, #tpu.memory_space<vmem>>, vector<1x1x4xf32>,
    } else {
    }
    return
  }
  func.func @transform_0(%arg0: i32, %arg1: i32, %arg2: i32) -> (i32, i32, i32) {
    %c0_i32 = arith.constant 0 : i32
    return %arg0, %arg1, %arg2 : i32, i32, i32
  }
  func.func @transform_1(%arg0: i32, %arg1: i32, %arg2: i32) -> (i32, i32, i32) {
    %c0_i32 = arith.constant 0 : i32
    %c0_i32_0 = arith.constant 0 : i32
    return %arg0, %c0_i32, %arg1 : i32, i32, i32
  }
}

</mosaic_0001>

<llo_original>
// kernel: tpu_custom_call.1
$region0: #{tpu_custom_call.1}
  #allocation0 [shape = 'u32[]', space=smem, size = 0x4, offset = 0x4, fixed_abs, tag = 'smem constant byte address 0x4 - core index']
  #allocation1 [shape = 'u32[72,128]{1,0:T(1,128)}', space=vmem, size = 0x9000, scoped, tag = 'internal scratch']
  #allocation2 [shape = 'f32[1,4,256]{2,1,0:T(4,128)}', space=vmem, size = 0x1000, scoped, tag = 'scratch operand']
  %s0 = inlined_call_operand.hbm [shape: f32[2,4,256], index: 0, kind: input, shape index: {}]
  %s1 = inlined_call_operand.hbm [shape: f32[2,1,4], index: 1, kind: output, shape index: {}]
  %s2 = sld [smem:[#allocation0]]
  $region49: #{tpu_custom_call.1} parent=0
    _
  %s4 = ssub.s32 1, %s2
  %s5 = scalar_select 0, %s4, %s2
  $region1: #{tpu_custom_call.1} parent=0
    #allocation3 [shape = 'u8[8192]{0}', space=vmem, size = 0x2000, scoped, tag = 'input window, operand 0']
    #allocation4 [shape = 's32[2]{0}', space=sflag, size = 0x8, scoped, tag = 'scoped memory for tpu_custom_call.1']
    #allocation5 [shape = 's32[2]{0}', space=sflag, size = 0x8, scoped, tag = 'scoped memory for tpu_custom_call.1']
    #allocation6 [shape = 'u8[1024]{0}', space=vmem, size = 0x400, scoped, tag = 'output window, operand 0']
    %6 = vsyncpa [#allocation4], 0
    %s7 = scalar_lea.sflag [#allocation4], 1
    %8 = vsyncpa %s7, 0
    %9 = vsyncpa [#allocation5], 0
    %s10 = scalar_lea.sflag [#allocation5], 1
    %11 = vsyncpa %s10, 0
    loop: start=0, step=1, limit=4
    $region2: #{tpu_custom_call.1} parent=1 // loop_pre_header
      _
    $region3: #{tpu_custom_call.1} parent=1 // loop_header
      %s13 = sphi 0, %s17
      %p14 = scmp.ge.s32.totalorder %s13, 4
      %s20 = sphi 0, %s39
      %s21 = sphi 0, %s35
      %s22 = sphi 0, %s31
      %s23 = sphi 0, %s20
      %s24 = sphi 0, %s21
      %s25 = sphi 0, %s22
      %s26 = sphi 0, %s23
      %s27 = sphi 0, %s24
      %s28 = sphi 0, %s25
      %s46 = sphi 0, %s48
      %s49 = sphi 0, %s46
      %s50 = sphi 0, %s49
      %s66 = sphi 0, %s50
      %s74 = sphi 0, %s76
      %s77 = sphi 0, %s74
      %s78 = sphi 0, %s77
      %s94 = sphi 0, %s78
    $region4: #{tpu_custom_call.1} parent=1 // loop_header_branch
      %16 = sbr.rel (%p14) target = $region8
    $region5: #{tpu_custom_call.1} parent=1 // loop_body
      %s18 = ssub.s32 %s13, 1
      %s19 = ssub.s32 %s13, 2
      %s29 = sadd.s32 1, %s22
      %p30 = scmp.ge.s32.totalorder %s29, 1
      %s31 = scalar_select %p30, 0, %s29
      %s32 = sadd.s32 1, %s21
      %s33 = scalar_select %p30, %s32, %s21
      %p34 = scmp.ge.s32.totalorder %s33, 1
      %s35 = scalar_select %p34, 0, %s33
      %s36 = sadd.s32 1, %s20
      %s37 = scalar_select %p34, %s36, %s20
      %p38 = scmp.ge.s32.totalorder %s37, 2
      %s39 = scalar_select %p38, 0, %s37
      %s40 = ssub.s32 %s20, %s39
      %s41 = ssub.s32 %s21, %s35
      %s42 = sor.u32 %s40, %s41
      %s43 = ssub.s32 %s22, %s31
      %s44 = sor.u32 %s42, %s43
      %p45 = scmp.eq.s32.totalorder %s44, 0
      %s47 = sadd.s32 %s46, 1
      %s48 = scalar_select %p45, %s46, %s47
      %p51 = pneg %p45
      %p52 = scmp.eq.s32.totalorder %s13, 1
      %p53 = por %p51, %p52
      %p54 = scmp.ne.s32.totalorder %s46, %s49
      %p55 = scmp.eq.s32.totalorder %s13, 0
      %p56 = por %p54, %p55
      %p57 = scmp.ne.s32.totalorder %s46, %s49
      %p58 = scmp.eq.s32.totalorder %s18, 1
      %p59 = por %p57, %p58
      %p60 = scmp.ne.s32.totalorder %s49, %s50
      %p61 = scmp.eq.s32.totalorder %s18, 0
      %p62 = por %p60, %p61
      %p63 = scmp.ne.s32.totalorder %s49, %s50
      %p64 = scmp.eq.s32.totalorder %s19, 1
      %p65 = por %p63, %p64
      %p67 = scmp.ne.s32.totalorder %s50, %s66
      %p68 = scmp.eq.s32.totalorder %s19, 0
      %p69 = por %p67, %p68
      %s70 = ssub.s32 %s20, %s39
      %s71 = ssub.s32 %s21, %s35
      %s72 = sor.u32 %s70, %s71
      %p73 = scmp.eq.s32.totalorder %s72, 0
      %s75 = sadd.s32 %s74, 1
      %s76 = scalar_select %p73, %s74, %s75
      %p79 = pneg %p73
      %p80 = scmp.eq.s32.totalorder %s13, 1
      %p81 = por %p79, %p80
      %p82 = scmp.ne.s32.totalorder %s74, %s77
      %p83 = scmp.eq.s32.totalorder %s13, 0
      %p84 = por %p82, %p83
      %p85 = scmp.ne.s32.totalorder %s74, %s77
      %p86 = scmp.eq.s32.totalorder %s18, 1
      %p87 = por %p85, %p86
      %p88 = scmp.ne.s32.totalorder %s77, %s78
      %p89 = scmp.eq.s32.totalorder %s18, 0
      %p90 = por %p88, %p89
      %p91 = scmp.ne.s32.totalorder %s77, %s78
      %p92 = scmp.eq.s32.totalorder %s19, 1
      %p93 = por %p91, %p92
      %p95 = scmp.ne.s32.totalorder %s78, %s94
      %p96 = scmp.eq.s32.totalorder %s19, 0
      %p97 = por %p95, %p96
      %p98 = scmp.le.s32.totalorder 1, %s13
      %p99 = scmp.lt.s32.totalorder %s13, 3
      %p100 = pnand %p98, %p99
      %p101 = pneg %p100
      // Predicated region
      $region9: #{tpu_custom_call.1} parent=5 // pred_check
        _
      $region10: #{tpu_custom_call.1} parent=5 // pred_check_branch
        %103 = sbr.rel (%p100) target = $region12
      $region11: #{tpu_custom_call.1} parent=5 // pred_region
        %s104 = ssub.s32 %s13, 1
      $region12: #{tpu_custom_call.1} parent=5 // pred_fallthru
        _
      %p105 = scmp.lt.s32.totalorder %s13, 2
      // Predicated region
      $region13: #{tpu_custom_call.1} parent=5 // pred_check
        %p106 = pneg %p105
      $region14: #{tpu_custom_call.1} parent=5 // pred_check_branch
        %108 = sbr.rel (%p106) target = $region16
      $region15: #{tpu_custom_call.1} parent=5 // pred_region
        // Predicated region
        $region17: #{tpu_custom_call.1} parent=15 // pred_check
          %p109 = pneg %p56
        $region18: #{tpu_custom_call.1} parent=15 // pred_check_branch
          %111 = sbr.rel (%p109) target = $region20
        $region19: #{tpu_custom_call.1} parent=15 // pred_region
          %s112 = sand.u32 %s46, 1
          %s113 = scalar_lea.sflag [#allocation4], %s112
          %s114 = sand.u32 %s46, 1
          %s115 = smul.addr %s114, 8
          %s116 = scalar_lea.vmem [#allocation3], %s115
          %s117 = smul.u32 2, %s22
          %119 = vsyncadd %s113, 0
          %s120 = smul.addr %s21, 2
          %s121 = sadd.s32 %s117, %s120
          %s122 = smul.addr %s20, 2
          %s123 = sadd.s32 %s121, %s122
          %s124 = smul.addr %s123, 4
          %s125 = scalar_lea.hbm %s0, %s124
          %s127 = sshll.u32 %s125, 4
          %s128 = int_to_ptr.hbm [resolvable:$true] %s127
          %s129 = sshll.u32 %s116, 4
          %s130 = int_to_ptr.vmem [resolvable:$true] %s129
          %132 = dma.hbm_to_vmem [thread:$0]  %s128, 128, %s130, %s113
        $region20: #{tpu_custom_call.1} parent=15 // pred_fallthru
          _
      $region16: #{tpu_custom_call.1} parent=5 // pred_fallthru
        _
      %p133 = scmp.le.s32.totalorder 1, %s13
      %p134 = scmp.lt.s32.totalorder %s13, 3
      %p135 = pnand %p133, %p134
      %p136 = pneg %p135
      // Predicated region
      $region21: #{tpu_custom_call.1} parent=5 // pred_check
        _
      $region22: #{tpu_custom_call.1} parent=5 // pred_check_branch
        %138 = sbr.rel (%p135) target = $region24
      $region23: #{tpu_custom_call.1} parent=5 // pred_region
        %s139 = ssub.s32 %s13, 1
        %s140 = sand.u32 %s49, 1
        %s141 = scalar_lea.sflag [#allocation4], %s140
        %s142 = sand.u32 %s49, 1
        %s143 = smul.addr %s142, 8
        %s144 = scalar_lea.vmem [#allocation3], %s143
        // Predicated region
        $region25: #{tpu_custom_call.1} parent=23 // pred_check
          %p145 = pneg %p62
        $region26: #{tpu_custom_call.1} parent=23 // pred_check_branch
          %147 = sbr.rel (%p145) target = $region28
        $region27: #{tpu_custom_call.1} parent=23 // pred_region
          %149 = dma.done %s141, 128
        $region28: #{tpu_custom_call.1} parent=23 // pred_fallthru
          _
        %s150 = sand.u32 %s49, 1
        %s151 = scalar_lea.sflag [#allocation4], %s150
        %s152 = sand.u32 %s49, 1
        %s153 = smul.addr %s152, 8
        %s154 = scalar_lea.vmem [#allocation3], %s153
        %p155 = pneg %p62
        %p156 = pneg %p59
        %p157 = pneg %p90
        %p158 = pneg %p87
        %s159 = sand.u32 %s77, 1
        %s160 = scalar_lea.sflag [#allocation5], %s159
        %s161 = sand.u32 %s77, 1
        %s162 = scalar_lea.vmem [#allocation6], %s161
        %s163 = smul.u32 2, %s25
        %p164 = scmp.eq.s32.totalorder %s25, 0
        // Predicated region
        $region29: #{tpu_custom_call.1} parent=23 // pred_check
          %p165 = pneg %p164
        $region30: #{tpu_custom_call.1} parent=23 // pred_check_branch
          %167 = sbr.rel (%p165) target = $region32
        $region31: #{tpu_custom_call.1} parent=23 // pred_region
          %168 = vst [vmem:[#allocation2] sm:$0xff] 0.0
        $region32: #{tpu_custom_call.1} parent=23 // pred_fallthru
          _
        %v169 = vld [vmem:[%s144] sm:$0xff]
        %v170 = vld [vmem:[#allocation2] sm:$0xff]
        %v171 = vadd.f32 %v170, %v169
        %172 = vst [vmem:[#allocation2] sm:$0xff] %v171
        // Predicated region
        $region33: #{tpu_custom_call.1} parent=23 // pred_check
          %p173 = pneg %p164
        $region34: #{tpu_custom_call.1} parent=23 // pred_check_branch
          %175 = sbr.rel (%p173) target = $region36
        $region35: #{tpu_custom_call.1} parent=23 // pred_region
          %v176 = vld [vmem:[#allocation2] sm:$0xff]
          %178 = vst [vmem:[#allocation1] ss:$2 sm:$0xff] %v176
          %v179 = vld.sshfl [vmem:[#allocation1] sm:$0xff pattern:$0x75316420]
          %v180 = vld.sshfl [vmem:[#allocation1 + $0x8] sm:$0xff pattern:$0x75316420]
          %vm183 = vcmask 1043456
          %v184 = vsel %vm183, %v179, 0.0
          %v185 = vsel %vm183, %v180, 0.0
          %v186 = vadd.f32 %v184, %v185
          %187 = vadd.xlane.f32.xlu0 %v186
          %v188 = vpop.xlane.xlu0 %187
          %v189 = vmul.f32 %v188, 0.00390625
          %v191 = vlaneseq
          %v192 = vand.u32 %v191, 127
          %v193 = vperm.slane %v189, %v192
          %vm195 = vcmask 24576
          %196 = vst.msk [vmem:[%s162] sm:$0x1] %vm195, %v193
        $region36: #{tpu_custom_call.1} parent=23 // pred_fallthru
          _
        %s197 = sand.u32 %s77, 1
        %s198 = scalar_lea.sflag [#allocation5], %s197
        %s199 = sand.u32 %s77, 1
        %s200 = scalar_lea.vmem [#allocation6], %s199
        // Predicated region
        $region37: #{tpu_custom_call.1} parent=23 // pred_check
          %p201 = pneg %p87
        $region38: #{tpu_custom_call.1} parent=23 // pred_check_branch
          %203 = sbr.rel (%p201) target = $region40
        $region39: #{tpu_custom_call.1} parent=23 // pred_region
          %205 = vsyncadd %s198, 0
          %s206 = sadd.s32 %s24, %s23
          %s207 = scalar_lea.hbm %s1, %s206
          %s209 = sshll.u32 %s200, 4
          %s210 = int_to_ptr.vmem [resolvable:$true] %s209
          %s211 = sshll.u32 %s207, 4
          %s212 = int_to_ptr.hbm [resolvable:$true] %s211
          %214 = dma.vmem_to_hbm [thread:$0]  %s210, 16, %s212, %s198
        $region40: #{tpu_custom_call.1} parent=23 // pred_fallthru
          _
      $region24: #{tpu_custom_call.1} parent=5 // pred_fallthru
        _
      %p215 = scmp.le.s32.totalorder 2, %s13
      // Predicated region
      $region41: #{tpu_custom_call.1} parent=5 // pred_check
        %p216 = pneg %p215
      $region42: #{tpu_custom_call.1} parent=5 // pred_check_branch
        %218 = sbr.rel (%p216) target = $region44
      $region43: #{tpu_custom_call.1} parent=5 // pred_region
        %s219 = ssub.s32 %s13, 2
        // Predicated region
        $region45: #{tpu_custom_call.1} parent=43 // pred_check
          %p220 = pneg %p93
        $region46: #{tpu_custom_call.1} parent=43 // pred_check_branch
          %222 = sbr.rel (%p220) target = $region48
        $region47: #{tpu_custom_call.1} parent=43 // pred_region
          %s223 = sand.u32 %s78, 1
          %s224 = scalar_lea.sflag [#allocation5], %s223
          %s225 = sand.u32 %s78, 1
          %s226 = scalar_lea.vmem [#allocation6], %s225
          %228 = dma.done %s224, 16
        $region48: #{tpu_custom_call.1} parent=43 // pred_fallthru
          _
      $region44: #{tpu_custom_call.1} parent=5 // pred_fallthru
        _
    $region6: #{tpu_custom_call.1} parent=1 // loop_footer
      %s17 = sadd.s32 1, %s13
    $region7: #{tpu_custom_call.1} parent=1 // loop_footer_branch
      %12 = sbr.rel target = $region3
    $region8: #{tpu_custom_call.1} parent=1 // loop_exit
      _
    %229 = vsyncpa [#allocation4], 1
    %s230 = scalar_lea.sflag [#allocation4], 1
    %231 = vsyncpa %s230, 1
    %232 = vsyncpa [#allocation5], 1
    %s233 = scalar_lea.sflag [#allocation5], 1
    %234 = vsyncpa %s233, 1

</llo_original>
